<compile_context>
chip_gen: v7x
topology: tpu7x:2x2x1
jax: 0.10.0
libtpu: 0.0.40
codegen_flags: <defaults>
</compile_context>

<pallas_src>
import jax
import jax.numpy as jnp
from jax.experimental import pallas as pl
from jax.experimental.pallas import tpu as pltpu


def _round_up(x, m):
    return (x + m - 1) // m * m


def _cdiv(a, b):
    return (a + b - 1) // b


def _rawnet_kernel(xT_ref, w1t_ref, b1_ref, w2t_ref, b2_ref, w3_ref, b3_ref, o_ref):
    # Transposed (batch-on-lanes) layout: activations are [features, batch_tile].
    xT = xT_ref[...]                                   # (2, TN) f32
    w1t = w1t_ref[...]                                 # (H, 2) f32

    # Layer 1 (K=2): two broadcast FMAs on the VPU instead of an MXU round-trip.
    h1_pre = (w1t[:, 0:1] * xT[0:1, :]
              + w1t[:, 1:2] * xT[1:2, :]
              + b1_ref[...])                           # (H, TN) f32
    h1 = jnp.tanh(h1_pre)                              # (H, TN) f32

    # Layer 2: bf16 x bf16 -> f32 on the MXU (W2 already stored bf16 in VMEM).
    h2_pre = jnp.dot(
        w2t_ref[...], h1.astype(jnp.bfloat16),
        preferred_element_type=jnp.float32,
    ) + b2_ref[...]                                    # (H, TN) f32
    h2 = jnp.tanh(h2_pre)                              # (H, TN) f32

    # Layer 3 off the MXU: VPU multiply + sublane (XLU) reduce over H.
    z = jnp.sum(h2 * w3_ref[...], axis=0, keepdims=True) + b3_ref[0]   # (1, TN)
    o_ref[...] = jax.nn.sigmoid(z)                     # lane-dense (1, TN) store


def rawnet_forward(x, params, *, block_n=16384):
    """x: (N, 2) float32. params: dict of w1,b1,w2,b2,w3,b3 (stored [in,out]).

    Returns (N, 1) float32, same semantics as the PyTorch RawNet.forward
    (layer-2 matmul runs in bf16 with f32 accumulation).
    """
    n = x.shape[0]
    h = params["w1"].shape[1]

    # Batch tile on the 128-wide lane axis.  Target ceil(N/2) per tile so the
    # parallel grid has >=2 steps for v7x's two TensorCores when N > 128.
    tn = min(block_n, _round_up(_cdiv(n, 2), 128))
    # Cap the tile so ~4 live (H, tn) f32 intermediates stay well under the
    # v7x 64 MiB / 32 MiB-scoped per-TC VMEM budget.
    max_tn_for_vmem = max(128, ((24 << 20) // (16 * h)) // 128 * 128)
    tn = min(tn, max_tn_for_vmem)
    n_pad = _round_up(n, tn)

    xT = x.T.astype(jnp.float32)                       # (2, N) one-time transpose
    if n_pad != n:
        xT = jnp.pad(xT, ((0, 0), (0, n_pad - n)))

    # Transposed weight layout so the kernel computes W^T @ x^T (batch on lanes).
    w1t = params["w1"].T.astype(jnp.float32)           # (H, 2)
    w2t = params["w2"].T.astype(jnp.bfloat16)          # (H, H) bf16 -> MXU native
    w3c = params["w3"].reshape(h, 1).astype(jnp.float32)   # (H, 1) column for VPU/XLU
    b1t = params["b1"].reshape(h, 1).astype(jnp.float32)   # (H, 1)
    b2t = params["b2"].reshape(h, 1).astype(jnp.float32)   # (H, 1)
    b3s = params["b3"].reshape(1).astype(jnp.float32)      # (1,) SMEM scalar

    grid = (n_pad // tn,)

    # Rough VMEM footprint: live intermediates + double-buffered streams + weights.
    est_bytes = (4 * 3 * h * tn                        # h1_pre / h1 / h2 (f32)
                 + 2 * (2 * tn * 4 + tn * 4)           # x tile + out tile, dbl-buffered
                 + 2 * (h * 2 * 4 + h * h * 2 + 4 * h * 4 + 4))
    vmem_limit = int(min(48 << 20, max(32 << 20, 2 * est_bytes)))

    cost = pl.CostEstimate(
        flops=int(2 * n_pad * (2 * h + h * h + h)),
        transcendentals=int(n_pad * (2 * h + 1)),
        bytes_accessed=int(n_pad * (2 * 4 + 4)
                           + 4 * (2 * h + h + 2 * h + h + 1) + 2 * h * h),
    )

    out_t = pl.pallas_call(
        _rawnet_kernel,
        out_shape=jax.ShapeDtypeStruct((1, n_pad), jnp.float32),
        grid=grid,
        in_specs=[
            pl.BlockSpec((2, tn), lambda i: (0, i)),            # x^T tile (streamed)
            pl.BlockSpec((h, 2), lambda i: (0, 0)),             # W1^T (VMEM-resident)
            pl.BlockSpec((h, 1), lambda i: (0, 0)),             # b1
            pl.BlockSpec((h, h), lambda i: (0, 0)),             # W2^T (bf16)
            pl.BlockSpec((h, 1), lambda i: (0, 0)),             # b2
            pl.BlockSpec((h, 1), lambda i: (0, 0)),             # W3 column
            pl.BlockSpec(memory_space=pltpu.MemorySpace.SMEM),  # b3 scalar
        ],
        out_specs=pl.BlockSpec((1, tn), lambda i: (0, i)),      # lane-dense output
        compiler_params=pltpu.CompilerParams(
            dimension_semantics=("parallel",),
            vmem_limit_bytes=vmem_limit,
        ),
        cost_estimate=cost,
    )(xT, w1t, b1t, w2t, b2t, w3c, b3s)

    return out_t[0, :n].reshape(n, 1)


def init_rawnet_params(key, num_hid):
    """Deterministic init mimicking PyTorch nn.Linear default (U[-1/sqrt(fan_in), +])."""
    k1, k2, k3, k4, k5, k6 = jax.random.split(key, 6)

    def uniform(k, shape, fan_in):
        bound = 1.0 / jnp.sqrt(jnp.float32(fan_in))
        return jax.random.uniform(k, shape, jnp.float32, -bound, bound)

    return {
        # stored as [in, out] so the reference computes x @ W + b
        "w1": uniform(k1, (2, num_hid), 2),
        "b1": uniform(k2, (1, num_hid), 2),
        "w2": uniform(k3, (num_hid, num_hid), num_hid),
        "b2": uniform(k4, (1, num_hid), num_hid),
        "w3": uniform(k5, (num_hid, 1), num_hid),
        "b3": uniform(k6, (1, 1), num_hid),
    }


def rawnet_reference(x, p):
    """Pure-JAX f32 reference for the same forward pass."""
    h1 = jnp.tanh(x @ p["w1"] + p["b1"])
    h2 = jnp.tanh(h1 @ p["w2"] + p["b2"])
    return jax.nn.sigmoid(h2 @ p["w3"] + p["b3"])


if __name__ == "__main__":
    key = jax.random.PRNGKey(0)
    k_param, k_x, k_x2 = jax.random.split(key, 3)

    num_hid = 32
    batch = 8
    params = init_rawnet_params(k_param, num_hid)
    x = jax.random.normal(k_x, (batch, 2), dtype=jnp.float32)

    out = rawnet_forward(x, params)
    out = jax.block_until_ready(out)
    ref = rawnet_reference(x, params)
    assert out.shape == (batch, 1), out.shape
    # Layer 2 runs bf16-on-MXU with f32 accumulation -> loosened tolerance.
    assert jnp.allclose(out, ref, atol=1e-2, rtol=1e-2), "mismatch vs reference"

    # Second check exercises the multi-tile grid + batch-padding path.
    x2 = jax.random.normal(k_x2, (300, 2), dtype=jnp.float32)
    out2 = jax.block_until_ready(rawnet_forward(x2, params))
    ref2 = rawnet_reference(x2, params)
    assert out2.shape == (300, 1), out2.shape
    assert jnp.allclose(out2, ref2, atol=1e-2, rtol=1e-2), "mismatch vs reference (tiled)"

    print("KERNEL_OK")
</pallas_src>

<mosaic_0001>
module attributes {stable_mosaic.version = 11 : i64} {
  func.func @_rawnet_kernel(%arg0: i32, %arg1: memref<2x128xf32, #tpu.memory_space<vmem>>, %arg2: memref<32x2xf32, #tpu.memory_space<vmem>>, %arg3: memref<32x1xf32, #tpu.memory_space<vmem>>, %arg4: memref<32x32xbf16, #tpu.memory_space<vmem>>, %arg5: memref<32x1xf32, #tpu.memory_space<vmem>>, %arg6: memref<32x1xf32, #tpu.memory_space<vmem>>, %arg7: memref<1xf32, #tpu.memory_space<smem>>, %arg8: memref<1x128xf32, #tpu.memory_space<vmem>>) attributes {dimension_semantics = [#tpu.dimension_semantics<parallel>], iteration_bounds = array<i64: 1>, scalar_prefetch = 0 : i64, scratch_operands = 0 : i64, tpu.core_type = #tpu.core_type<tc>, window_params = [{transform_indices = @transform_0, window_bounds = array<i64: 2, 128>}, {pipeline_mode = #tpu.pipeline_mode<synchronous>, transform_indices = @transform_1, window_bounds = array<i64: 32, 2>}, {pipeline_mode = #tpu.pipeline_mode<synchronous>, transform_indices = @transform_2, window_bounds = array<i64: 32, 1>}, {pipeline_mode = #tpu.pipeline_mode<synchronous>, transform_indices = @transform_3, window_bounds = array<i64: 32, 32>}, {pipeline_mode = #tpu.pipeline_mode<synchronous>, transform_indices = @transform_4, window_bounds = array<i64: 32, 1>}, {pipeline_mode = #tpu.pipeline_mode<synchronous>, transform_indices = @transform_5, window_bounds = array<i64: 32, 1>}, {transform_indices = @transform_6, window_bounds = array<i64: 1>}, {transform_indices = @transform_7, window_bounds = array<i64: 1, 128>}]} {
    %c0 = arith.constant 0 : index
    %c0_0 = arith.constant 0 : index
    %0 = vector.load %arg1[%c0, %c0_0] : memref<2x128xf32, #tpu.memory_space<vmem>>, vector<2x128xf32>
    %c0_1 = arith.constant 0 : index
    %c0_2 = arith.constant 0 : index
    %1 = vector.load %arg2[%c0_1, %c0_2] : memref<32x2xf32, #tpu.memory_space<vmem>>, vector<32x2xf32>
    %2 = vector.extract_strided_slice %1 {offsets = [0, 0], sizes = [32, 1], strides = [1, 1]} : vector<32x2xf32> to vector<32x1xf32>
    %3 = vector.extract_strided_slice %0 {offsets = [0, 0], sizes = [1, 128], strides = [1, 1]} : vector<2x128xf32> to vector<1x128xf32>
    %4 = vector.broadcast %2 : vector<32x1xf32> to vector<32x128xf32>
    %5 = vector.broadcast %3 : vector<1x128xf32> to vector<32x128xf32>
    %6 = arith.mulf %4, %5 : vector<32x128xf32>
    %7 = vector.extract_strided_slice %1 {offsets = [0, 1], sizes = [32, 1], strides = [1, 1]} : vector<32x2xf32> to vector<32x1xf32>
    %8 = vector.extract_strided_slice %0 {offsets = [1, 0], sizes = [1, 128], strides = [1, 1]} : vector<2x128xf32> to vector<1x128xf32>
    %9 = vector.broadcast %7 : vector<32x1xf32> to vector<32x128xf32>
    %10 = vector.broadcast %8 : vector<1x128xf32> to vector<32x128xf32>
    %11 = arith.mulf %9, %10 : vector<32x128xf32>
    %12 = arith.addf %6, %11 : vector<32x128xf32>
    %c0_3 = arith.constant 0 : index
    %c0_4 = arith.constant 0 : index
    %13 = vector.load %arg3[%c0_3, %c0_4] : memref<32x1xf32, #tpu.memory_space<vmem>>, vector<32x1xf32>
    %14 = vector.broadcast %13 : vector<32x1xf32> to vector<32x128xf32>
    %15 = arith.addf %12, %14 : vector<32x128xf32>
    %16 = math.tanh %15 : vector<32x128xf32>
    %c0_5 = arith.constant 0 : index
    %c0_6 = arith.constant 0 : index
    %17 = vector.load %arg4[%c0_5, %c0_6] : memref<32x32xbf16, #tpu.memory_space<vmem>>, vector<32x32xbf16>
    %18 = arith.truncf %16 : vector<32x128xf32> to vector<32x128xbf16>
    %cst = arith.constant dense<0.000000e+00> : vector<32x128xf32>
    %19 = tpu.matmul %17, %18, %cst {dimension_numbers = #tpu.dot_dimension_numbers<[1], [0], [0], [1], [0, 0, 1, 1], [], []>} : vector<32x32xbf16>, vector<32x128xbf16>, vector<32x128xf32> -> vector<32x128xf32>
    %c0_7 = arith.constant 0 : index
    %c0_8 = arith.constant 0 : index
    %20 = vector.load %arg5[%c0_7, %c0_8] : memref<32x1xf32, #tpu.memory_space<vmem>>, vector<32x1xf32>
    %21 = vector.broadcast %20 : vector<32x1xf32> to vector<32x128xf32>
    %22 = arith.addf %19, %21 : vector<32x128xf32>
    %23 = math.tanh %22 : vector<32x128xf32>
    %c0_9 = arith.constant 0 : index
    %c0_10 = arith.constant 0 : index
    %24 = vector.load %arg6[%c0_9, %c0_10] : memref<32x1xf32, #tpu.memory_space<vmem>>, vector<32x1xf32>
    %25 = vector.broadcast %24 : vector<32x1xf32> to vector<32x128xf32>
    %26 = arith.mulf %23, %25 : vector<32x128xf32>
    %cst_11 = arith.constant dense<0.000000e+00> : vector<128xf32>
    %27 = vector.multi_reduction <add>, %26, %cst_11 [0] : vector<32x128xf32> to vector<128xf32>
    %28 = vector.shape_cast %27 : vector<128xf32> to vector<1x128xf32>
    %c0_12 = arith.constant 0 : index
    %29 = memref.load %arg7[%c0_12] : memref<1xf32, #tpu.memory_space<smem>>
    %30 = vector.broadcast %29 : f32 to vector<1x128xf32>
    %31 = arith.addf %28, %30 : vector<1x128xf32>
    %32 = arith.negf %31 : vector<1x128xf32>
    %33 = math.exp %32 : vector<1x128xf32>
    %cst_13 = arith.constant 1.000000e+00 : f32
    %34 = vector.broadcast %cst_13 : f32 to vector<1x128xf32>
    %35 = arith.addf %34, %33 : vector<1x128xf32>
    %36 = arith.divf %34, %35 : vector<1x128xf32>
    %c0_14 = arith.constant 0 : index
    %c0_15 = arith.constant 0 : index
    %37 = vector.load %arg8[%c0_14, %c0_15] : memref<1x128xf32, #tpu.memory_space<vmem>>, vector<1x128xf32>
    tpu.vector_store %arg8[%c0_14, %c0_15], %36 {strides = array<i32>} : memref<1x128xf32, #tpu.memory_space<vmem>>, vector<1x128xf32>,
    return
  }
  func.func @transform_0(%arg0: i32) -> (i32, i32) {
    %c0_i32 = arith.constant 0 : i32
    %c0_i32_0 = arith.constant 0 : i32
    return %c0_i32, %arg0 : i32, i32
  }
  func.func @transform_1(%arg0: i32) -> (i32, i32) {
    %c0_i32 = arith.constant 0 : i32
    %c0_i32_0 = arith.constant 0 : i32
    %c0_i32_1 = arith.constant 0 : i32
    return %c0_i32, %c0_i32_0 : i32, i32
  }
  func.func @transform_2(%arg0: i32) -> (i32, i32) {
    %c0_i32 = arith.constant 0 : i32
    %c0_i32_0 = arith.constant 0 : i32
    %c0_i32_1 = arith.constant 0 : i32
    return %c0_i32, %c0_i32_0 : i32, i32
  }
  func.func @transform_3(%arg0: i32) -> (i32, i32) {
    %c0_i32 = arith.constant 0 : i32
    %c0_i32_0 = arith.constant 0 : i32
    %c0_i32_1 = arith.constant 0 : i32
    return %c0_i32, %c0_i32_0 : i32, i32
  }
  func.func @transform_4(%arg0: i32) -> (i32, i32) {
    %c0_i32 = arith.constant 0 : i32
    %c0_i32_0 = arith.constant 0 : i32
    %c0_i32_1 = arith.constant 0 : i32
    return %c0_i32, %c0_i32_0 : i32, i32
  }
  func.func @transform_5(%arg0: i32) -> (i32, i32) {
    %c0_i32 = arith.constant 0 : i32
    %c0_i32_0 = arith.constant 0 : i32
    %c0_i32_1 = arith.constant 0 : i32
    return %c0_i32, %c0_i32_0 : i32, i32
  }
  func.func @transform_6(%arg0: i32) -> i32 {
    %c0_i32 = arith.constant 0 : i32
    %c0_i32_0 = arith.constant 0 : i32
    return %c0_i32 : i32
  }
  func.func @transform_7(%arg0: i32) -> (i32, i32) {
    %c0_i32 = arith.constant 0 : i32
    %c0_i32_0 = arith.constant 0 : i32
    return %c0_i32, %arg0 : i32, i32
  }
}

</mosaic_0001>

<llo_original>
// kernel: tpu_custom_call.1
$region0: #{tpu_custom_call.1}
  #allocation0 [shape = 'u32[]', space=smem, size = 0x4, offset = 0x4, fixed_abs, tag = 'smem constant byte address 0x4 - core index']
  #allocation1 [shape = 'u32[144,128]{1,0:T(1,128)}', space=vmem, size = 0x12000, scoped, tag = 'internal scratch']
  #allocation2 [shape = 'f32[1]{0:T(128)S(6)}', space=smem, size = 0x200, scoped, tag = 'scoped memory for tpu_custom_call.1']
  %s0 = inlined_call_operand.vmem [shape: f32[2,128], index: 0, kind: input, shape index: {}]
  %s1 = inlined_call_operand.vmem [shape: f32[32,2], index: 1, kind: input, shape index: {}]
  %s2 = inlined_call_operand.vmem [shape: f32[32,1], index: 2, kind: input, shape index: {}]
  %s3 = inlined_call_operand.vmem [shape: bf16[32,32], index: 3, kind: input, shape index: {}]
  %s4 = inlined_call_operand.vmem [shape: f32[32,1], index: 4, kind: input, shape index: {}]
  %s5 = inlined_call_operand.vmem [shape: f32[32,1], index: 5, kind: input, shape index: {}]
  %s6 = inlined_call_operand.<no memory space> [shape: f32[1], index: 6, kind: input, shape index: {}]
  %s7 = inlined_call_operand.hbm [shape: f32[1,128], index: 7, kind: output, shape index: {}]
  %s8 = sld [smem:[#allocation0]]
  $region38: #{tpu_custom_call.1} parent=0
    _
  %s10 = ssub.s32 1, %s8
  %s11 = scalar_select 0, %s10, %s8
  %12 = sst [smem:[#allocation2]] %s6
  $region1: #{tpu_custom_call.1} parent=0
    #allocation3 [shape = 'u8[512]{0}', space=vmem, size = 0x400, scoped, tag = 'output window, operand 0, single buffered']
    #allocation4 [shape = 's32[1]{0}', space=sflag, size = 0x4, scoped, tag = 'scoped memory for tpu_custom_call.1']
    %13 = vsyncpa [#allocation4], 0
    // Predicated region
    $region2: #{tpu_custom_call.1} parent=1 // pred_check
      _
    $region3: #{tpu_custom_call.1} parent=1 // pred_check_branch
      %15 = sbr.rel (0) target = $region5
    $region4: #{tpu_custom_call.1} parent=1 // pred_region
      _
    $region5: #{tpu_custom_call.1} parent=1 // pred_fallthru
      _
    // Predicated region
    $region6: #{tpu_custom_call.1} parent=1 // pred_check
      _
    $region7: #{tpu_custom_call.1} parent=1 // pred_check_branch
      %17 = sbr.rel (0) target = $region9
    $region8: #{tpu_custom_call.1} parent=1 // pred_region
      _
    $region9: #{tpu_custom_call.1} parent=1 // pred_fallthru
      _
    // Predicated region
    $region10: #{tpu_custom_call.1} parent=1 // pred_check
      _
    $region11: #{tpu_custom_call.1} parent=1 // pred_check_branch
      %19 = sbr.rel (0) target = $region13
    $region12: #{tpu_custom_call.1} parent=1 // pred_region
      _
    $region13: #{tpu_custom_call.1} parent=1 // pred_fallthru
      _
    // Predicated region
    $region14: #{tpu_custom_call.1} parent=1 // pred_check
      _
    $region15: #{tpu_custom_call.1} parent=1 // pred_check_branch
      %21 = sbr.rel (0) target = $region17
    $region16: #{tpu_custom_call.1} parent=1 // pred_region
      _
    $region17: #{tpu_custom_call.1} parent=1 // pred_fallthru
      _
    // Predicated region
    $region18: #{tpu_custom_call.1} parent=1 // pred_check
      _
    $region19: #{tpu_custom_call.1} parent=1 // pred_check_branch
      %23 = sbr.rel (0) target = $region21
    $region20: #{tpu_custom_call.1} parent=1 // pred_region
      _
    $region21: #{tpu_custom_call.1} parent=1 // pred_fallthru
      _
    // Predicated region
    $region22: #{tpu_custom_call.1} parent=1 // pred_check
      _
    $region23: #{tpu_custom_call.1} parent=1 // pred_check_branch
      %25 = sbr.rel (0) target = $region25
    $region24: #{tpu_custom_call.1} parent=1 // pred_region
      _
    $region25: #{tpu_custom_call.1} parent=1 // pred_fallthru
      _
    // Predicated region
    $region26: #{tpu_custom_call.1} parent=1 // pred_check
      _
    $region27: #{tpu_custom_call.1} parent=1 // pred_check_branch
      %27 = sbr.rel (0) target = $region29
    $region28: #{tpu_custom_call.1} parent=1 // pred_region
      _
    $region29: #{tpu_custom_call.1} parent=1 // pred_fallthru
      _
    %v29 = vld [vmem:[%s0] sm:$0x3]
    %v30 = vld [vmem:[%s1] sm:$0xff]
    %v31 = vld [vmem:[%s1 + $0x8] sm:$0xff]
    %v32 = vld [vmem:[%s1 + $0x10] sm:$0xff]
    %v33 = vld [vmem:[%s1 + $0x18] sm:$0xff]
    %35 = vset.pattern.permute.xlu0 0
    %36 = vperm.xlu0 %35, %v30
    %v37 = vpop.permute.xlu0 %36
    %40 = vset.pattern.permute.xlu0 0
    %41 = vperm.xlu0 %40, %v31
    %v42 = vpop.permute.xlu0 %41
    %45 = vset.pattern.permute.xlu0 0
    %46 = vperm.xlu0 %45, %v32
    %v47 = vpop.permute.xlu0 %46
    %50 = vset.pattern.permute.xlu0 0
    %51 = vperm.xlu0 %50, %v33
    %v52 = vpop.permute.xlu0 %51
    %v54 = vlaneseq
    %v55 = vshrl.u32 %v54, 7
    %v56 = vsub.s32 0, %v55
    %v57 = vrot.slane %v29, %v56
    %v58 = vmul.f32 %v37, %v57
    %v59 = vmul.f32 %v42, %v57
    %v60 = vmul.f32 %v47, %v57
    %v61 = vmul.f32 %v52, %v57
    %62 = vset.pattern.permute.xlu0 1
    %63 = vperm.xlu0 %62, %v30
    %v64 = vpop.permute.xlu0 %63
    %66 = vset.pattern.permute.xlu0 1
    %67 = vperm.xlu0 %66, %v31
    %v68 = vpop.permute.xlu0 %67
    %70 = vset.pattern.permute.xlu0 1
    %71 = vperm.xlu0 %70, %v32
    %v72 = vpop.permute.xlu0 %71
    %74 = vset.pattern.permute.xlu0 1
    %75 = vperm.xlu0 %74, %v33
    %v76 = vpop.permute.xlu0 %75
    %v78 = vlaneseq
    %v79 = vshrl.u32 %v78, 7
    %v80 = vsub.s32 1, %v79
    %v81 = vrot.slane %v29, %v80
    %v82 = vmul.f32 %v64, %v81
    %v83 = vmul.f32 %v68, %v81
    %v84 = vmul.f32 %v72, %v81
    %v85 = vmul.f32 %v76, %v81
    %v86 = vadd.f32 %v58, %v82
    %v87 = vadd.f32 %v59, %v83
    %v88 = vadd.f32 %v60, %v84
    %v89 = vadd.f32 %v61, %v85
    %v90 = vld [vmem:[%s2] sm:$0xff]
    %v91 = vld [vmem:[%s2 + $0x8] sm:$0xff]
    %v92 = vld [vmem:[%s2 + $0x10] sm:$0xff]
    %v93 = vld [vmem:[%s2 + $0x18] sm:$0xff]
    %95 = vset.pattern.permute.xlu0 0
    %96 = vperm.xlu0 %95, %v90
    %v97 = vpop.permute.xlu0 %96
    %100 = vset.pattern.permute.xlu0 0
    %101 = vperm.xlu0 %100, %v91
    %v102 = vpop.permute.xlu0 %101
    %105 = vset.pattern.permute.xlu0 0
    %106 = vperm.xlu0 %105, %v92
    %v107 = vpop.permute.xlu0 %106
    %110 = vset.pattern.permute.xlu0 0
    %111 = vperm.xlu0 %110, %v93
    %v112 = vpop.permute.xlu0 %111
    %v114 = vadd.f32 %v86, %v97
    %v115 = vadd.f32 %v87, %v102
    %v116 = vadd.f32 %v88, %v107
    %v117 = vadd.f32 %v89, %v112
    %v118 = vtanh.pop %v114
    %v119 = vtanh.pop %v115
    %v120 = vtanh.pop %v116
    %v121 = vtanh.pop %v117
    %v122 = vld [vmem:[%s3] sm:$0xf]
    %v123 = vld [vmem:[%s3 + $0x4] sm:$0xf]
    %v124 = vld [vmem:[%s3 + $0x8] sm:$0xf]
    %v125 = vld [vmem:[%s3 + $0xc] sm:$0xf]
    %v126 = vpack.c.bf16 %v119, %v118
    %v127 = vpack.c.bf16 %v121, %v120
    %v128 = vld [vmem:[%s4] sm:$0xff]
    %v129 = vld [vmem:[%s4 + $0x8] sm:$0xff]
    %v130 = vld [vmem:[%s4 + $0x10] sm:$0xff]
    %v131 = vld [vmem:[%s4 + $0x18] sm:$0xff]
    %133 = vset.pattern.permute.xlu0 0
    %134 = vperm.xlu0 %133, %v128
    %v135 = vpop.permute.xlu0 %134
    %138 = vset.pattern.permute.xlu0 0
    %139 = vperm.xlu0 %138, %v129
    %v140 = vpop.permute.xlu0 %139
    %143 = vset.pattern.permute.xlu0 0
    %144 = vperm.xlu0 %143, %v130
    %v145 = vpop.permute.xlu0 %144
    %148 = vset.pattern.permute.xlu0 0
    %149 = vperm.xlu0 %148, %v131
    %v150 = vpop.permute.xlu0 %149
    %v156 = vunpack.c.l.b16 %v122
    %v157 = vunpack.c.l.b16 %v123
    %v158 = vunpack.c.l.b16 %v124
    %v159 = vunpack.c.l.b16 %v125
    %v160 = vpack.c.b16 %v157, %v156
    %v161 = vpack.c.b16 %v159, %v158
    %vm162 = vcmask 261120
    %v164 = vsel %vm162, %v160, 0
    %v167 = vsel %vm162, %v161, 0
    %169 = vmatprep.subr.bf16.mxu0 0
    %170 = vmatpush1.bf16.msra.mxu0 %v126
    %171 = vmatprep.subr.bf16.mxu0 0
    %172 = vmatpush1.bf16.msra.mxu0 %v127
    %173 = vmatprep.subr.bf16.mxu0 0
    %174 = vmatpush1.bf16.msra.mxu0 0
    %175 = vmatprep.subr.bf16.mxu0 0
    %176 = vmatpush1.bf16.msra.mxu0 0
    %177 = vmatprep.subr.bf16.mxu0 0
    %178 = vmatpush1.bf16.msra.mxu0 0
    %179 = vmatprep.subr.bf16.mxu0 0
    %180 = vmatpush1.bf16.msra.mxu0 0
    %181 = vmatprep.subr.bf16.mxu0 0
    %182 = vmatpush1.bf16.msra.mxu0 0
    %183 = vmatprep.subr.bf16.mxu0 0
    %184 = vmatpush1.bf16.msra.mxu0 0
    %185 = vmatprep.subr.bf16.mxu0 0
    %186 = vmatpush1.bf16.msra.mxu0 0
    %187 = vmatprep.subr.bf16.mxu0 0
    %188 = vmatpush1.bf16.msra.mxu0 0
    %189 = vmatprep.subr.bf16.mxu0 0
    %190 = vmatpush1.bf16.msra.mxu0 0
    %191 = vmatprep.subr.bf16.mxu0 0
    %192 = vmatpush1.bf16.msra.mxu0 0
    %193 = vmatprep.subr.bf16.mxu0 0
    %194 = vmatpush1.bf16.msra.mxu0 0
    %195 = vmatprep.subr.bf16.mxu0 0
    %196 = vmatpush1.bf16.msra.mxu0 0
    %197 = vmatprep.subr.bf16.mxu0 0
    %198 = vmatpush1.bf16.msra.mxu0 0
    %199 = vmatprep.subr.bf16.mxu0 0
    %200 = vmatpush1.bf16.msra.mxu0 0
    %201 = vmatprep.mubr.bf16.mxu0 0
    %202 = vmatmul.mubr.bf16.gmra.mrb[0].mxu0 %v164
    %v203 = vpop.f32.mrb[0].mxu0
    %v204 = vadd.f32 %v135, %v203
    %v205 = vpop.f32.mrb[0].mxu0
    %v206 = vpop.f32.mrb[0].mxu0
    %v207 = vadd.f32 %v140, %v206
    %v208 = vpop.f32.mrb[0].mxu0
    %209 = vmatprep.mubr.bf16.mxu0 0
    %210 = vmatmul.mubr.bf16.gmra.mrb[0].mxu0 %v167
    %v211 = vpop.f32.mrb[0].mxu0
    %v212 = vadd.f32 %v145, %v211
    %v213 = vpop.f32.mrb[0].mxu0
    %v214 = vpop.f32.mrb[0].mxu0
    %v215 = vadd.f32 %v150, %v214
    %v216 = vpop.f32.mrb[0].mxu0
    %217 = vdwg.mxu0
    %v218 = vtanh.pop %v204
    %v219 = vtanh.pop %v207
    %v220 = vtanh.pop %v212
    %v221 = vtanh.pop %v215
    %v222 = vld [vmem:[%s5] sm:$0xff]
    %v223 = vld [vmem:[%s5 + $0x8] sm:$0xff]
    %v224 = vld [vmem:[%s5 + $0x10] sm:$0xff]
    %v225 = vld [vmem:[%s5 + $0x18] sm:$0xff]
    %227 = vset.pattern.permute.xlu0 0
    %228 = vperm.xlu0 %227, %v222
    %v229 = vpop.permute.xlu0 %228
    %232 = vset.pattern.permute.xlu0 0
    %233 = vperm.xlu0 %232, %v223
    %v234 = vpop.permute.xlu0 %233
    %237 = vset.pattern.permute.xlu0 0
    %238 = vperm.xlu0 %237, %v224
    %v239 = vpop.permute.xlu0 %238
    %242 = vset.pattern.permute.xlu0 0
    %243 = vperm.xlu0 %242, %v225
    %v244 = vpop.permute.xlu0 %243
    %v246 = vmul.f32 %v218, %v229
    %v247 = vmul.f32 %v219, %v234
    %v248 = vmul.f32 %v220, %v239
    %v249 = vmul.f32 %v221, %v244
    %v250 = vadd.f32 %v246, %v247
    %v251 = vadd.f32 %v250, %v248
    %v252 = vadd.f32 %v251, %v249
    %v253 = vrot.slane %v252, 4
    %v254 = vadd.f32 %v252, %v253
    %v255 = vrot.slane %v254, 2
    %v256 = vadd.f32 %v254, %v255
    %v257 = vrot.slane %v256, 1
    %v258 = vadd.f32 %v256, %v257
    %s259 = sld [smem:[#allocation2]]
    %v260 = vstv %s259
    %v261 = vadd.f32 %v258, %v260
    %v262 = vxor.u32 %v261, 2147483648
    %v263 = vmul.f32 %v262, 1.442695
    %v264 = vpow.pop %v263
    %v265 = vadd.f32 %v264, 1.0
    %v266 = vrcp.pop %v265
    %v267 = vmul.f32 1.0, %v266
    %268 = vst [vmem:[#allocation3] sm:$0x1] %v267
    // Predicated region
    $region30: #{tpu_custom_call.1} parent=1 // pred_check
      _
    $region31: #{tpu_custom_call.1} parent=1 // pred_check_branch
      %270 = sbr.rel (0) target = $region33
    $region32: #{tpu_custom_call.1} parent=1 // pred_region
      %s272 = ssub.s32 16, 16
      %273 = vsyncadd [#allocation4], %s272
      %s275 = sshll.u32 [#allocation3], 4
      %s276 = int_to_ptr.vmem [resolvable:$true] %s275
      %278 = dma.vmem_to_hbm [thread:$0]  %s276, 16, %s7, [#allocation4]
    $region33: #{tpu_custom_call.1} parent=1 // pred_fallthru
      _
    // Predicated region
    $region34: #{tpu_custom_call.1} parent=1 // pred_check
      _
    $region35: #{tpu_custom_call.1} parent=1 // pred_check_branch
      %280 = sbr.rel (0) target = $region37
    $region36: #{tpu_custom_call.1} parent=1 // pred_region
      %281 = dma.done [#allocation4], 16
    $region37: #{tpu_custom_call.1} parent=1 // pred_fallthru
      _
    %282 = vsyncpa [#allocation4], 1

</llo_original>
